<compile_context>
chip_gen: v6e
topology: v6e:2x2x1
jax: 0.10.0
libtpu: 0.0.40
codegen_flags: <defaults>
</compile_context>

<pallas_src>
import functools

import jax
import jax.numpy as jnp
import numpy as np
from jax import lax
from jax.experimental import pallas as pl
from jax.experimental.pallas import tpu as pltpu


_VMEM_TILE_BUDGET = 24 * 1024 * 1024   # ~4 live tile buffers; safe on v7x (64 MiB physical)
_VMEM_LIMIT_BYTES = 48 * 1024 * 1024   # below physical VMEM on v5e/v6e (128 MiB) and v7x (64 MiB)


def _round_up(a, b):
    return (a + b - 1) // b * b


def _pick_row_tile(n_pack, dp, itemsize):
    """Pick a row tile: as big as possible (mem-bound sweet spot) under the VMEM budget."""
    per_row = 4 * dp * max(int(itemsize), 4)          # 2x in + 2x out buffers, >=f32 wide
    cap = max(8, _VMEM_TILE_BUDGET // per_row)
    rt = min(1024, cap)
    rt = min(rt, _round_up(n_pack, 8))
    return max(8, (rt // 8) * 8)


# ---------------------------------------------------------------------------
# Kernel 1: fused per-column sum + sum-of-squares (single streaming read of x)
#   Input is presented as (rows/8, 8, Dp) so partial sums stay sublane-local
#   (pure VPU adds per tile); output rows 0:8 = sum partials, 8:16 = sumsq partials.
# ---------------------------------------------------------------------------
def _colstats_kernel(x_ref, stat_ref):
    i = pl.program_id(0)

    @pl.when(i == 0)
    def _():
        stat_ref[...] = jnp.zeros_like(stat_ref)

    x3 = x_ref[...].astype(jnp.float32)            # (rt//8, 8, dp)
    stat_ref[0:8, :] += jnp.sum(x3, axis=0)        # per-column sum, 8 sublane partials
    stat_ref[8:16, :] += jnp.sum(x3 * x3, axis=0)  # per-column sum of squares


# ---------------------------------------------------------------------------
# Kernel 2 ('PN'): x = (x - col_mean) * factor, factor = scale / rownorm_mean (SMEM scalar)
# ---------------------------------------------------------------------------
def _pn_scale_kernel(factor_ref, x_ref, mean_ref, o_ref):
    xc = x_ref[...].astype(jnp.float32) - mean_ref[...]
    o_ref[...] = (xc * factor_ref[0]).astype(o_ref.dtype)


# ---------------------------------------------------------------------------
# Kernel 3 ('PN-SI' / 'PN-SCS'), plain layout (Dp == D): per-row norm via lane reduce
# ---------------------------------------------------------------------------
def _rowwise_kernel(x_ref, mean_ref, o_ref, *, scale, center_first):
    x = x_ref[...].astype(jnp.float32)
    m = mean_ref[...]
    xc = x - m
    base = xc if center_first else x
    ss = jnp.sum(base * base, axis=1, keepdims=True)
    inv = scale * lax.rsqrt(1e-6 + ss)             # EUP rsqrt + multiply (no divide)
    if center_first:                               # 'PN-SI'
        o_ref[...] = (xc * inv).astype(o_ref.dtype)
    else:                                          # 'PN-SCS'
        o_ref[...] = (x * inv - m).astype(o_ref.dtype)


# ---------------------------------------------------------------------------
# Kernel 4 ('PN-SI' / 'PN-SCS'), lane-packed layout (Dp = k*D = 128):
#   per-original-row sums via block-diagonal indicator matmuls on the (idle) MXU.
# ---------------------------------------------------------------------------
def _rowwise_packed_kernel(x_ref, mean_ref, seg_ref, segt_ref, o_ref, *, scale, center_first):
    x = x_ref[...].astype(jnp.float32)             # (rt, k*D)
    m = mean_ref[...]                              # (1,  k*D)
    xc = x - m
    base = xc if center_first else x
    ss = jnp.dot(base * base, seg_ref[...], preferred_element_type=jnp.float32)   # (rt, k)
    inv = scale * lax.rsqrt(1e-6 + ss)                                             # (rt, k)
    invf = jnp.dot(inv, segt_ref[...], preferred_element_type=jnp.float32)         # (rt, k*D)
    if center_first:                               # 'PN-SI'
        o_ref[...] = (xc * invf).astype(o_ref.dtype)
    else:                                          # 'PN-SCS'
        o_ref[...] = (x * invf - m).astype(o_ref.dtype)


# ---------------------------------------------------------------------------
# Wrapper
# ---------------------------------------------------------------------------
def pairnorm(x, mode="PN-SI", scale=1.0, row_tile=None):
    assert mode in ["None", "PN", "PN-SI", "PN-SCS"]
    if mode == "None":
        return x

    n, d = x.shape
    out_dtype = x.dtype
    scale = float(scale)

    # Lane packing: if D < 128 and divides 128, process k consecutive rows side-by-side
    # so every vreg / output store is a dense 128-lane write.
    k = (128 // d) if (d < 128 and 128 % d == 0) else 1
    dp = k * d

    itemsize = jnp.dtype(x.dtype).itemsize
    rt = row_tile if row_tile is not None else _pick_row_tile(-(-n // k), dp, itemsize)
    rt = max(8, (rt // 8) * 8)

    n_pack = -(-n // k)
    n_pack_pad = _round_up(n_pack, rt)
    n_rows_pad = n_pack_pad * k

    xp = x
    if n_rows_pad != n:                       # zero rows don't perturb column sums
        xp = jnp.pad(x, ((0, n_rows_pad - n), (0, 0)))
    xp = xp.reshape(n_pack_pad, dp)           # lane-packed 2-D view
    xp3 = xp.reshape(n_pack_pad // 8, 8, dp)  # sublane-grouped 3-D view (stats pass)

    grid = (n_pack_pad // rt,)
    x_spec = pl.BlockSpec((rt, dp), lambda i: (i, 0))
    x3_spec = pl.BlockSpec((rt // 8, 8, dp), lambda i: (i, 0, 0))
    mean_spec = pl.BlockSpec((1, dp), lambda i: (0, 0))

    params_reduce = pltpu.CompilerParams(
        dimension_semantics=("arbitrary",), vmem_limit_bytes=_VMEM_LIMIT_BYTES)
    params_par = pltpu.CompilerParams(
        dimension_semantics=("parallel",), vmem_limit_bytes=_VMEM_LIMIT_BYTES)

    # ---- pass 1: fused column sum + sum-of-squares ---------------------------------
    stats = pl.pallas_call(
        _colstats_kernel,
        out_shape=jax.ShapeDtypeStruct((16, dp), jnp.float32),
        grid_spec=pltpu.PrefetchScalarGridSpec(
            num_scalar_prefetch=0,
            grid=grid,
            in_specs=[x3_spec],
            out_specs=pl.BlockSpec((16, dp), lambda i: (0, 0)),
        ),
        compiler_params=params_reduce,
    )(xp3)

    # tiny wrapper-side finalize: 8->1 sublane combine + unpack the k feature slices
    col_sum = stats[0:8].sum(axis=0).reshape(k, d).sum(axis=0)     # (d,)
    col_sq = stats[8:16].sum(axis=0).reshape(k, d).sum(axis=0)     # (d,)
    col_mean = col_sum / n                                          # (d,) f32
    mean_p = jnp.tile(col_mean, k).reshape(1, dp).astype(jnp.float32)

    if mode == "PN":
        # sum((x - mu)^2) = sum(x^2) - n * sum(mu^2)   (removes a full re-read of x)
        ssq = jnp.maximum(col_sq.sum() - n * jnp.sum(col_mean * col_mean), 0.0)
        factor = (scale * lax.rsqrt(1e-6 + ssq / n)).astype(jnp.float32).reshape(1)

        out_p = pl.pallas_call(
            _pn_scale_kernel,
            out_shape=jax.ShapeDtypeStruct((n_pack_pad, dp), out_dtype),
            grid_spec=pltpu.PrefetchScalarGridSpec(
                num_scalar_prefetch=0,
                grid=grid,
                in_specs=[
                    pl.BlockSpec(memory_space=pltpu.MemorySpace.SMEM),  # factor scalar
                    x_spec,
                    mean_spec,
                ],
                out_specs=x_spec,
            ),
            compiler_params=params_par,
        )(factor, xp, mean_p)

    else:  # 'PN-SI' or 'PN-SCS'
        center_first = (mode == "PN-SI")
        if k > 1:
            # block-diagonal indicator: seg[c, j] = 1 iff packed column c belongs to slice j
            seg = (jnp.arange(dp)[:, None] // d
                   == jnp.arange(k)[None, :]).astype(jnp.float32)      # (dp, k)
            segt = jnp.transpose(seg)                                    # (k, dp)
            out_p = pl.pallas_call(
                functools.partial(_rowwise_packed_kernel, scale=scale,
                                  center_first=center_first),
                out_shape=jax.ShapeDtypeStruct((n_pack_pad, dp), out_dtype),
                grid_spec=pltpu.PrefetchScalarGridSpec(
                    num_scalar_prefetch=0,
                    grid=grid,
                    in_specs=[x_spec, mean_spec,
                              pl.BlockSpec((dp, k), lambda i: (0, 0)),
                              pl.BlockSpec((k, dp), lambda i: (0, 0))],
                    out_specs=x_spec,
                ),
                compiler_params=params_par,
            )(xp, mean_p, seg, segt)
        else:
            out_p = pl.pallas_call(
                functools.partial(_rowwise_kernel, scale=scale,
                                  center_first=center_first),
                out_shape=jax.ShapeDtypeStruct((n_pack_pad, dp), out_dtype),
                grid_spec=pltpu.PrefetchScalarGridSpec(
                    num_scalar_prefetch=0,
                    grid=grid,
                    in_specs=[x_spec, mean_spec],
                    out_specs=x_spec,
                ),
                compiler_params=params_par,
            )(xp, mean_p)

    out = out_p.reshape(n_rows_pad, d)
    if n_rows_pad != n:
        out = out[:n]
    return out


# ---------------------------------------------------------------------------
# Pure-JAX reference (mirrors the PyTorch forward exactly)
# ---------------------------------------------------------------------------
def pairnorm_ref(x, mode="PN-SI", scale=1.0):
    if mode == "None":
        return x
    col_mean = x.mean(axis=0)
    if mode == "PN":
        xc = x - col_mean
        rownorm_mean = jnp.sqrt(1e-6 + (xc**2).sum(axis=1).mean())
        return scale * xc / rownorm_mean
    if mode == "PN-SI":
        xc = x - col_mean
        rn = jnp.sqrt(1e-6 + (xc**2).sum(axis=1, keepdims=True))
        return scale * xc / rn
    if mode == "PN-SCS":
        rn = jnp.sqrt(1e-6 + (x**2).sum(axis=1, keepdims=True))
        return scale * x / rn - col_mean
    return x


if __name__ == "__main__":
    key = jax.random.PRNGKey(0)
    ok = True

    # Case 1: small feature dim -> lane-packed path (k = 128 // 32 = 4).
    N, D = 128, 32
    x1 = jax.random.normal(key, (N, D), dtype=jnp.float32)
    for mode in ["PN-SI", "PN", "PN-SCS", "None"]:
        out = jax.block_until_ready(pairnorm(x1, mode=mode, scale=1.0))
        ref = pairnorm_ref(x1, mode=mode, scale=1.0)
        if not np.allclose(np.asarray(out), np.asarray(ref), rtol=1e-4, atol=1e-5):
            ok = False
            print("MISMATCH:", mode, (N, D))

    # Case 2: ragged N + D >= 128 (non-packed path, row padding exercised).
    key2 = jax.random.fold_in(key, 1)
    x2 = jax.random.normal(key2, (100, 160), dtype=jnp.float32)
    for mode in ["PN-SI", "PN", "PN-SCS"]:
        out = jax.block_until_ready(pairnorm(x2, mode=mode, scale=2.0))
        ref = pairnorm_ref(x2, mode=mode, scale=2.0)
        if not np.allclose(np.asarray(out), np.asarray(ref), rtol=1e-4, atol=1e-5):
            ok = False
            print("MISMATCH:", mode, (100, 160))

    if ok:
        print("KERNEL_OK")
</pallas_src>

<mosaic_0001>
module attributes {stable_mosaic.version = 11 : i64} {
  func.func @_colstats_kernel(%arg0: i32, %arg1: memref<4x8x128xf32, #tpu.memory_space<vmem>>, %arg2: memref<16x128xf32, #tpu.memory_space<vmem>>) attributes {dimension_semantics = [#tpu.dimension_semantics<arbitrary>], iteration_bounds = array<i64: 1>, scalar_prefetch = 0 : i64, scratch_operands = 0 : i64, tpu.core_type = #tpu.core_type<tc>, window_params = [{transform_indices = @transform_0, window_bounds = array<i64: 4, 8, 128>}, {pipeline_mode = #tpu.pipeline_mode<synchronous>, transform_indices = @transform_1, window_bounds = array<i64: 16, 128>}]} {
    %c0_i32 = arith.constant 0 : i32
    %0 = arith.cmpi eq, %arg0, %c0_i32 : i32
    %1 = arith.extui %0 : i1 to i32
    %c0_i32_0 = arith.constant 0 : i32
    %2 = arith.cmpi ne, %1, %c0_i32_0 : i32
    scf.if %2 {
      %cst_11 = arith.constant 0.000000e+00 : f32
      %13 = vector.broadcast %cst_11 : f32 to vector<16x128xf32>
      %c0_12 = arith.constant 0 : index
      %c0_13 = arith.constant 0 : index
      %14 = vector.load %arg2[%c0_12, %c0_13] : memref<16x128xf32, #tpu.memory_space<vmem>>, vector<16x128xf32>
      tpu.vector_store %arg2[%c0_12, %c0_13], %13 {strides = array<i32>} : memref<16x128xf32, #tpu.memory_space<vmem>>, vector<16x128xf32>,
    } else {
    }
    %c0 = arith.constant 0 : index
    %c0_1 = arith.constant 0 : index
    %c0_2 = arith.constant 0 : index
    %3 = vector.load %arg1[%c0, %c0_1, %c0_2] : memref<4x8x128xf32, #tpu.memory_space<vmem>>, vector<4x8x128xf32>
    %c0_3 = arith.constant 0 : index
    %c0_4 = arith.constant 0 : index
    %4 = vector.load %arg2[%c0_3, %c0_4] : memref<16x128xf32, #tpu.memory_space<vmem>>, vector<8x128xf32>
    %cst = arith.constant dense<0.000000e+00> : vector<8x128xf32>
    %5 = vector.multi_reduction <add>, %3, %cst [0] : vector<4x8x128xf32> to vector<8x128xf32>
    %6 = arith.addf %4, %5 : vector<8x128xf32>
    %c0_5 = arith.constant 0 : index
    %c0_6 = arith.constant 0 : index
    %7 = vector.load %arg2[%c0_5, %c0_6] : memref<16x128xf32, #tpu.memory_space<vmem>>, vector<8x128xf32>
    tpu.vector_store %arg2[%c0_5, %c0_6], %6 {strides = array<i32>} : memref<16x128xf32, #tpu.memory_space<vmem>>, vector<8x128xf32>,
    %c8 = arith.constant 8 : index
    %c0_7 = arith.constant 0 : index
    %8 = vector.load %arg2[%c8, %c0_7] : memref<16x128xf32, #tpu.memory_space<vmem>>, vector<8x128xf32>
    %9 = arith.mulf %3, %3 : vector<4x8x128xf32>
    %cst_8 = arith.constant dense<0.000000e+00> : vector<8x128xf32>
    %10 = vector.multi_reduction <add>, %9, %cst_8 [0] : vector<4x8x128xf32> to vector<8x128xf32>
    %11 = arith.addf %8, %10 : vector<8x128xf32>
    %c8_9 = arith.constant 8 : index
    %c0_10 = arith.constant 0 : index
    %12 = vector.load %arg2[%c8_9, %c0_10] : memref<16x128xf32, #tpu.memory_space<vmem>>, vector<8x128xf32>
    tpu.vector_store %arg2[%c8_9, %c0_10], %11 {strides = array<i32>} : memref<16x128xf32, #tpu.memory_space<vmem>>, vector<8x128xf32>,
    return
  }
  func.func @transform_0(%arg0: i32) -> (i32, i32, i32) {
    %c0_i32 = arith.constant 0 : i32
    %c0_i32_0 = arith.constant 0 : i32
    %c0_i32_1 = arith.constant 0 : i32
    return %arg0, %c0_i32, %c0_i32_0 : i32, i32, i32
  }
  func.func @transform_1(%arg0: i32) -> (i32, i32) {
    %c0_i32 = arith.constant 0 : i32
    %c0_i32_0 = arith.constant 0 : i32
    %c0_i32_1 = arith.constant 0 : i32
    return %c0_i32, %c0_i32_0 : i32, i32
  }
}

</mosaic_0001>

<llo_original>
// kernel: tpu_custom_call.1
$region0: #{tpu_custom_call.1}
  #allocation0 [shape = 'u32[]', space=smem, size = 0x4, offset = 0x4, fixed_abs, tag = 'smem constant byte address 0x4 - core index']
  #allocation1 [shape = 'u32[144,128]{1,0:T(1,128)}', space=vmem, size = 0x12000, scoped, tag = 'internal scratch']
  %s0 = inlined_call_operand.hbm [shape: f32[4,8,128], index: 0, kind: input, shape index: {}]
  %s1 = inlined_call_operand.hbm [shape: f32[16,128], index: 1, kind: output, shape index: {}]
  %s2 = sld [smem:[#allocation0]]
  $region22: #{tpu_custom_call.1} parent=0
    _
  %s4 = ssub.s32 1, %s2
  %s5 = scalar_select 0, %s4, %s2
  $region1: #{tpu_custom_call.1} parent=0
    #allocation2 [shape = 'u8[16384]{0}', space=vmem, size = 0x4000, scoped, tag = 'input window, operand 0, single buffered']
    #allocation3 [shape = 's32[1]{0}', space=sflag, size = 0x4, scoped, tag = 'scoped memory for tpu_custom_call.1']
    #allocation4 [shape = 's32[1]{0}', space=sflag, size = 0x4, scoped, tag = 'scoped memory for tpu_custom_call.1']
    #allocation5 [shape = 'u8[8192]{0}', space=vmem, size = 0x2000, scoped, tag = 'output window, operand 0, single buffered']
    %6 = vsyncpa [#allocation3], 0
    %7 = vsyncpa [#allocation4], 0
    // Predicated region
    $region2: #{tpu_custom_call.1} parent=1 // pred_check
      _
    $region3: #{tpu_custom_call.1} parent=1 // pred_check_branch
      %9 = sbr.rel (0) target = $region5
    $region4: #{tpu_custom_call.1} parent=1 // pred_region
      %s11 = ssub.s32 512, 512
      %12 = vsyncadd [#allocation3], %s11
      %s13 = sshll.u32 [#allocation2], 4
      %s14 = int_to_ptr.vmem [resolvable:$true] %s13
      %19 = dma.hbm_to_vmem [thread:$0]  %s0, 512, %s14, [#allocation3], 128, 128, 8
    $region5: #{tpu_custom_call.1} parent=1 // pred_fallthru
      _
    // Predicated region
    $region6: #{tpu_custom_call.1} parent=1 // pred_check
      _
    $region7: #{tpu_custom_call.1} parent=1 // pred_check_branch
      %21 = sbr.rel (0) target = $region9
    $region8: #{tpu_custom_call.1} parent=1 // pred_region
      %22 = dma.done [#allocation3], 512
    $region9: #{tpu_custom_call.1} parent=1 // pred_fallthru
      _
    %p23 = scmp.eq.s32.totalorder 0, 0
    // Predicated region
    $region10: #{tpu_custom_call.1} parent=1 // pred_check
      %p24 = pneg %p23
    $region11: #{tpu_custom_call.1} parent=1 // pred_check_branch
      %26 = sbr.rel (%p24) target = $region13
    $region12: #{tpu_custom_call.1} parent=1 // pred_region
      %27 = vst [vmem:[#allocation5] sm:$0xff] 0.0
      %28 = vst [vmem:[#allocation5 + $0x8] sm:$0xff] 0.0
    $region13: #{tpu_custom_call.1} parent=1 // pred_fallthru
      _
    %v29 = vld [vmem:[#allocation2] sm:$0xff]
    %v30 = vld [vmem:[#allocation2 + $0x8] sm:$0xff]
    %v31 = vld [vmem:[#allocation2 + $0x10] sm:$0xff]
    %v32 = vld [vmem:[#allocation2 + $0x18] sm:$0xff]
    %v33 = vld [vmem:[#allocation5] sm:$0xff]
    %v34 = vadd.f32 %v29, %v30
    %v35 = vadd.f32 %v34, %v31
    %v36 = vadd.f32 %v35, %v32
    %v37 = vadd.f32 %v33, %v36
    %38 = vst [vmem:[#allocation5] sm:$0xff] %v37
    %v39 = vld [vmem:[#allocation5 + $0x8] sm:$0xff]
    %v40 = vmul.f32 %v29, %v29
    %v41 = vmul.f32 %v30, %v30
    %v42 = vmul.f32 %v31, %v31
    %v43 = vmul.f32 %v32, %v32
    %v44 = vadd.f32 %v40, %v41
    %v45 = vadd.f32 %v44, %v42
    %v46 = vadd.f32 %v45, %v43
    %v47 = vadd.f32 %v39, %v46
    %48 = vst [vmem:[#allocation5 + $0x8] sm:$0xff] %v47
    // Predicated region
    $region14: #{tpu_custom_call.1} parent=1 // pred_check
      _
    $region15: #{tpu_custom_call.1} parent=1 // pred_check_branch
      %50 = sbr.rel (0) target = $region17
    $region16: #{tpu_custom_call.1} parent=1 // pred_region
      %s52 = ssub.s32 256, 256
      %53 = vsyncadd [#allocation4], %s52
      %s54 = sshll.u32 [#allocation5], 4
      %s55 = int_to_ptr.vmem [resolvable:$true] %s54
      %60 = dma.vmem_to_hbm [thread:$0]  %s55, 256, %s1, [#allocation4], 128, 128, 8
    $region17: #{tpu_custom_call.1} parent=1 // pred_fallthru
      _
    // Predicated region
    $region18: #{tpu_custom_call.1} parent=1 // pred_check
      _
    $region19: #{tpu_custom_call.1} parent=1 // pred_check_branch
      %62 = sbr.rel (0) target = $region21
    $region20: #{tpu_custom_call.1} parent=1 // pred_region
      %63 = dma.done [#allocation4], 256
    $region21: #{tpu_custom_call.1} parent=1 // pred_fallthru
      _
    %64 = vsyncpa [#allocation3], 1
    %65 = vsyncpa [#allocation4], 1

</llo_original>
